<compile_context>
chip_gen: v7x
topology: tpu7x:2x2x1
jax: 0.10.0
libtpu: 0.0.40
codegen_flags: <defaults>
</compile_context>

<pallas_src>
import functools

import jax
import jax.numpy as jnp
from jax.experimental import pallas as pl
from jax.experimental.pallas import tpu as pltpu


def _round_up(x, m):
    return ((x + m - 1) // m) * m


def _pick_tile(total, candidates):
    for c in candidates:
        if total % c == 0:
            return c
    return candidates[-1]


def _lstm_cell_kernel(xh_ref, w_ref, b_ref, c_ref, h_out_ref, c_out_ref, *,
                      tile_h):
    th = tile_h
    # One MXU matmul over K = In_p + H_p producing all four gate columns
    # (f, i, o, c) for this hidden tile; accumulate in f32, bias add in f32.
    gates = jnp.dot(xh_ref[...], w_ref[...],
                    preferred_element_type=jnp.float32) + b_ref[...]

    # Gate slices land on 128-lane-aligned boundaries (th % 128 == 0).
    f_t = jax.nn.sigmoid(gates[:, 0 * th:1 * th])
    i_t = jax.nn.sigmoid(gates[:, 1 * th:2 * th])
    o_t = jax.nn.sigmoid(gates[:, 2 * th:3 * th])
    g_t = jnp.tanh(gates[:, 3 * th:4 * th])

    c_prev = c_ref[...]                       # float32 cell state
    c_t = f_t * c_prev + i_t * g_t
    h_t = o_t * jnp.tanh(c_t)

    c_out_ref[...] = c_t                      # keep cell state in float32
    h_out_ref[...] = h_t.astype(h_out_ref.dtype)


def lstm_cell(x_t, h_prev, c_prev, wx, wh, b, *,
              compute_dtype=jnp.bfloat16, interpret=False):
    """Single LSTM cell step. Returns (h_t, c_t).

    x_t:(B,In), h_prev/c_prev:(B,H), wx:(In,4H), wh:(H,4H), b:(1,4H)
    (gate order f, i, o, c; weights are nn.Linear weights transposed).
    h_t is returned in x_t.dtype, c_t always in float32.
    """
    B, In = x_t.shape
    H = h_prev.shape[-1]
    assert wx.shape == (In, 4 * H)
    assert wh.shape == (H, 4 * H)
    assert b.shape == (1, 4 * H)

    f32 = jnp.float32
    sub = 8 if jnp.dtype(compute_dtype).itemsize == 4 else 16
    Bp = _round_up(B, sub)                     # batch -> sublane multiple
    Hp = _round_up(H, 128)                     # hidden -> lane multiple
    Inp = _round_up(In, 128)
    K = Inp + Hp

    tb = Bp if Bp <= 256 else _pick_tile(Bp, (256, 128, 64, 32, 16, 8))
    th = Hp if Hp <= 512 else _pick_tile(Hp, (512, 256, 128))
    n_ht = Hp // th

    # --- Pack weights: [Wx; Wh] stacked on K, gate-aware hidden-tile-major ---
    w4 = jnp.concatenate([
        jnp.pad(wx.reshape(In, 4, H).astype(f32),
                ((0, Inp - In), (0, 0), (0, Hp - H))),
        jnp.pad(wh.reshape(H, 4, H).astype(f32),
                ((0, Hp - H), (0, 0), (0, Hp - H))),
    ], axis=0)                                                  # (K, 4, Hp)
    w_packed = (w4.reshape(K, 4, n_ht, th)
                  .transpose(0, 2, 1, 3)
                  .reshape(K, n_ht * 4 * th)
                  .astype(compute_dtype))                       # (K, 4*Hp)
    b_packed = (jnp.pad(b.reshape(1, 4, H).astype(f32),
                        ((0, 0), (0, 0), (0, Hp - H)))
                  .reshape(1, 4, n_ht, th)
                  .transpose(0, 2, 1, 3)
                  .reshape(1, n_ht * 4 * th))                   # f32 bias

    # --- Fused [x | h] operand (one MXU stream instead of two) ---
    xh = jnp.concatenate([
        jnp.pad(x_t.astype(compute_dtype), ((0, Bp - B), (0, Inp - In))),
        jnp.pad(h_prev.astype(compute_dtype), ((0, Bp - B), (0, Hp - H))),
    ], axis=1)                                                  # (Bp, K)
    c_in = jnp.pad(c_prev.astype(f32), ((0, Bp - B), (0, Hp - H)))

    grid = (Bp // tb, Hp // th)
    kernel = functools.partial(_lstm_cell_kernel, tile_h=th)

    h_pad, c_pad = pl.pallas_call(
        kernel,
        grid=grid,
        in_specs=[
            pl.BlockSpec((tb, K), lambda i, j: (i, 0)),        # [x|h] rows
            pl.BlockSpec((K, 4 * th), lambda i, j: (0, j)),    # gate block
            pl.BlockSpec((1, 4 * th), lambda i, j: (0, j)),    # bias block
            pl.BlockSpec((tb, th), lambda i, j: (i, j)),       # c_{t-1}
        ],
        out_specs=(
            pl.BlockSpec((tb, th), lambda i, j: (i, j)),       # h_t
            pl.BlockSpec((tb, th), lambda i, j: (i, j)),       # c_t (f32)
        ),
        out_shape=(
            jax.ShapeDtypeStruct((Bp, Hp), x_t.dtype),
            jax.ShapeDtypeStruct((Bp, Hp), jnp.float32),
        ),
        compiler_params=pltpu.CompilerParams(
            dimension_semantics=("parallel", "parallel"),
            vmem_limit_bytes=32 * 1024 * 1024,
        ),
        interpret=interpret,
    )(xh, w_packed, b_packed, c_in)

    return h_pad[:B, :H], c_pad[:B, :H]


def init_params(key, input_size, hidden_size, dtype=jnp.float32):
    """Init mimicking nn.Linear's U(-1/sqrt(fan_in), 1/sqrt(fan_in)).

    Returns stacked Wx:(In, 4H), Wh:(H, 4H), b:(1, 4H) with gate order f,i,o,c.
    """
    ks = jax.random.split(key, 16)
    kx = 1.0 / jnp.sqrt(jnp.float32(input_size))
    kh = 1.0 / jnp.sqrt(jnp.float32(hidden_size))

    wx_gates = [jax.random.uniform(ks[i], (input_size, hidden_size),
                                   dtype, -kx, kx) for i in range(4)]
    wh_gates = [jax.random.uniform(ks[4 + i], (hidden_size, hidden_size),
                                   dtype, -kh, kh) for i in range(4)]
    bx_gates = [jax.random.uniform(ks[8 + i], (hidden_size,),
                                   dtype, -kx, kx) for i in range(4)]
    bh_gates = [jax.random.uniform(ks[12 + i], (hidden_size,),
                                   dtype, -kh, kh) for i in range(4)]

    wx = jnp.concatenate(wx_gates, axis=1)                      # (In, 4H)
    wh = jnp.concatenate(wh_gates, axis=1)                      # (H, 4H)
    b = (jnp.concatenate(bx_gates) + jnp.concatenate(bh_gates)).reshape(1, -1)
    return wx, wh, b


def lstm_cell_reference(x_t, h_prev, c_prev, wx, wh, b):
    """Pure-JAX reference with identical semantics (for validation)."""
    H = h_prev.shape[-1]
    gates = x_t @ wx + h_prev @ wh + b
    f_t = jax.nn.sigmoid(gates[:, 0 * H:1 * H])
    i_t = jax.nn.sigmoid(gates[:, 1 * H:2 * H])
    o_t = jax.nn.sigmoid(gates[:, 2 * H:3 * H])
    g_t = jnp.tanh(gates[:, 3 * H:4 * H])
    c_t = f_t * c_prev + i_t * g_t
    h_t = o_t * jnp.tanh(c_t)
    return h_t, c_t


if __name__ == "__main__":
    batch, input_size, hidden_size = 2, 16, 32

    key = jax.random.PRNGKey(0)
    k_x, k_h, k_c, k_p = jax.random.split(key, 4)

    x_t = jax.random.normal(k_x, (batch, input_size), jnp.float32)
    h_prev = jax.random.normal(k_h, (batch, hidden_size), jnp.float32)
    c_prev = jax.random.normal(k_c, (batch, hidden_size), jnp.float32)
    wx, wh, b = init_params(k_p, input_size, hidden_size)

    h_ref, c_ref = lstm_cell_reference(x_t, h_prev, c_prev, wx, wh, b)

    # Exact path (f32 MXU operands) — tight tolerance vs reference.
    f32_cell = jax.jit(functools.partial(lstm_cell, compute_dtype=jnp.float32))
    h_t, c_t = f32_cell(x_t, h_prev, c_prev, wx, wh, b)
    jax.block_until_ready((h_t, c_t))
    assert h_t.shape == (batch, hidden_size)
    assert c_t.shape == (batch, hidden_size)
    assert jnp.allclose(h_t, h_ref, atol=1e-5, rtol=1e-5)
    assert jnp.allclose(c_t, c_ref, atol=1e-5, rtol=1e-5)

    # Fast path: bf16 MXU operands, f32 accumulate / gate math / cell state.
    bf16_cell = jax.jit(functools.partial(lstm_cell, compute_dtype=jnp.bfloat16))
    h_b, c_b = bf16_cell(x_t, h_prev, c_prev, wx, wh, b)
    jax.block_until_ready((h_b, c_b))
    assert jnp.allclose(h_b, h_ref, atol=3e-2, rtol=3e-2)
    assert jnp.allclose(c_b, c_ref, atol=3e-2, rtol=3e-2)

    print("KERNEL_OK")
</pallas_src>

<mosaic_0001>
module attributes {stable_mosaic.version = 11 : i64} {
  func.func @_lstm_cell_kernel(%arg0: i32, %arg1: i32, %arg2: memref<8x256xf32, #tpu.memory_space<vmem>>, %arg3: memref<256x512xf32, #tpu.memory_space<vmem>>, %arg4: memref<1x512xf32, #tpu.memory_space<vmem>>, %arg5: memref<8x128xf32, #tpu.memory_space<vmem>>, %arg6: memref<8x128xf32, #tpu.memory_space<vmem>>, %arg7: memref<8x128xf32, #tpu.memory_space<vmem>>) attributes {dimension_semantics = [#tpu.dimension_semantics<parallel>, #tpu.dimension_semantics<parallel>], iteration_bounds = array<i64: 1, 1>, scalar_prefetch = 0 : i64, scratch_operands = 0 : i64, tpu.core_type = #tpu.core_type<tc>, window_params = [{transform_indices = @transform_0, window_bounds = array<i64: 8, 256>}, {transform_indices = @transform_1, window_bounds = array<i64: 256, 512>}, {transform_indices = @transform_2, window_bounds = array<i64: 1, 512>}, {transform_indices = @transform_3, window_bounds = array<i64: 8, 128>}, {transform_indices = @transform_4, window_bounds = array<i64: 8, 128>}, {transform_indices = @transform_5, window_bounds = array<i64: 8, 128>}]} {
    %c0 = arith.constant 0 : index
    %c0_0 = arith.constant 0 : index
    %0 = vector.load %arg2[%c0, %c0_0] : memref<8x256xf32, #tpu.memory_space<vmem>>, vector<8x256xf32>
    %c0_1 = arith.constant 0 : index
    %c0_2 = arith.constant 0 : index
    %1 = vector.load %arg3[%c0_1, %c0_2] : memref<256x512xf32, #tpu.memory_space<vmem>>, vector<256x512xf32>
    %cst = arith.constant dense<0.000000e+00> : vector<8x512xf32>
    %2 = tpu.matmul %0, %1, %cst {dimension_numbers = #tpu.dot_dimension_numbers<[1], [0], [0], [1], [0, 0, 1, 1], [], []>} : vector<8x256xf32>, vector<256x512xf32>, vector<8x512xf32> -> vector<8x512xf32>
    %c0_3 = arith.constant 0 : index
    %c0_4 = arith.constant 0 : index
    %3 = vector.load %arg4[%c0_3, %c0_4] : memref<1x512xf32, #tpu.memory_space<vmem>>, vector<1x512xf32>
    %4 = vector.broadcast %3 : vector<1x512xf32> to vector<8x512xf32>
    %5 = arith.addf %2, %4 : vector<8x512xf32>
    %6 = vector.extract_strided_slice %5 {offsets = [0, 0], sizes = [8, 128], strides = [1, 1]} : vector<8x512xf32> to vector<8x128xf32>
    %7 = arith.negf %6 : vector<8x128xf32>
    %8 = math.exp %7 : vector<8x128xf32>
    %cst_5 = arith.constant 1.000000e+00 : f32
    %9 = vector.broadcast %cst_5 : f32 to vector<8x128xf32>
    %10 = arith.addf %9, %8 : vector<8x128xf32>
    %11 = arith.divf %9, %10 : vector<8x128xf32>
    %12 = vector.extract_strided_slice %5 {offsets = [0, 128], sizes = [8, 128], strides = [1, 1]} : vector<8x512xf32> to vector<8x128xf32>
    %13 = arith.negf %12 : vector<8x128xf32>
    %14 = math.exp %13 : vector<8x128xf32>
    %cst_6 = arith.constant 1.000000e+00 : f32
    %15 = vector.broadcast %cst_6 : f32 to vector<8x128xf32>
    %16 = arith.addf %15, %14 : vector<8x128xf32>
    %17 = arith.divf %15, %16 : vector<8x128xf32>
    %18 = vector.extract_strided_slice %5 {offsets = [0, 256], sizes = [8, 128], strides = [1, 1]} : vector<8x512xf32> to vector<8x128xf32>
    %19 = arith.negf %18 : vector<8x128xf32>
    %20 = math.exp %19 : vector<8x128xf32>
    %cst_7 = arith.constant 1.000000e+00 : f32
    %21 = vector.broadcast %cst_7 : f32 to vector<8x128xf32>
    %22 = arith.addf %21, %20 : vector<8x128xf32>
    %23 = arith.divf %21, %22 : vector<8x128xf32>
    %24 = vector.extract_strided_slice %5 {offsets = [0, 384], sizes = [8, 128], strides = [1, 1]} : vector<8x512xf32> to vector<8x128xf32>
    %25 = math.tanh %24 : vector<8x128xf32>
    %c0_8 = arith.constant 0 : index
    %c0_9 = arith.constant 0 : index
    %26 = vector.load %arg5[%c0_8, %c0_9] : memref<8x128xf32, #tpu.memory_space<vmem>>, vector<8x128xf32>
    %27 = arith.mulf %11, %26 : vector<8x128xf32>
    %28 = arith.mulf %17, %25 : vector<8x128xf32>
    %29 = arith.addf %27, %28 : vector<8x128xf32>
    %30 = math.tanh %29 : vector<8x128xf32>
    %31 = arith.mulf %23, %30 : vector<8x128xf32>
    %c0_10 = arith.constant 0 : index
    %c0_11 = arith.constant 0 : index
    %32 = vector.load %arg7[%c0_10, %c0_11] : memref<8x128xf32, #tpu.memory_space<vmem>>, vector<8x128xf32>
    tpu.vector_store %arg7[%c0_10, %c0_11], %29 {strides = array<i32>} : memref<8x128xf32, #tpu.memory_space<vmem>>, vector<8x128xf32>,
    %c0_12 = arith.constant 0 : index
    %c0_13 = arith.constant 0 : index
    %33 = vector.load %arg6[%c0_12, %c0_13] : memref<8x128xf32, #tpu.memory_space<vmem>>, vector<8x128xf32>
    tpu.vector_store %arg6[%c0_12, %c0_13], %31 {strides = array<i32>} : memref<8x128xf32, #tpu.memory_space<vmem>>, vector<8x128xf32>,
    return
  }
  func.func @transform_0(%arg0: i32, %arg1: i32) -> (i32, i32) {
    %c0_i32 = arith.constant 0 : i32
    %c0_i32_0 = arith.constant 0 : i32
    return %arg0, %c0_i32 : i32, i32
  }
  func.func @transform_1(%arg0: i32, %arg1: i32) -> (i32, i32) {
    %c0_i32 = arith.constant 0 : i32
    %c0_i32_0 = arith.constant 0 : i32
    return %c0_i32, %arg1 : i32, i32
  }
  func.func @transform_2(%arg0: i32, %arg1: i32) -> (i32, i32) {
    %c0_i32 = arith.constant 0 : i32
    %c0_i32_0 = arith.constant 0 : i32
    return %c0_i32, %arg1 : i32, i32
  }
  func.func @transform_3(%arg0: i32, %arg1: i32) -> (i32, i32) {
    %c0_i32 = arith.constant 0 : i32
    return %arg0, %arg1 : i32, i32
  }
  func.func @transform_4(%arg0: i32, %arg1: i32) -> (i32, i32) {
    %c0_i32 = arith.constant 0 : i32
    return %arg0, %arg1 : i32, i32
  }
  func.func @transform_5(%arg0: i32, %arg1: i32) -> (i32, i32) {
    %c0_i32 = arith.constant 0 : i32
    return %arg0, %arg1 : i32, i32
  }
}

</mosaic_0001>

<llo_original>
// kernel: lstm_cell.1
$region0: #{lstm_cell.1}
  #allocation0 [shape = 'u32[]', space=smem, size = 0x4, offset = 0x4, fixed_abs, tag = 'smem constant byte address 0x4 - core index']
  #allocation1 [shape = 'u32[144,128]{1,0:T(1,128)}', space=vmem, size = 0x12000, scoped, tag = 'internal scratch']
  %s0 = inlined_call_operand.vmem [shape: f32[8,256], index: 0, kind: input, shape index: {}]
  %s1 = inlined_call_operand.vmem [shape: f32[256,512], index: 1, kind: input, shape index: {}]
  %s2 = inlined_call_operand.vmem [shape: f32[1,512], index: 2, kind: input, shape index: {}]
  %s3 = inlined_call_operand.vmem [shape: f32[8,128], index: 3, kind: input, shape index: {}]
  %s4 = inlined_call_operand.vmem [shape: f32[8,128], index: 4, kind: output, shape index: {0}]
  %s5 = inlined_call_operand.vmem [shape: f32[8,128], index: 5, kind: output, shape index: {1}]
  %6 = xla_tuple %s4, %s5
  %s7 = sld [smem:[#allocation0]]
  $region34: #{lstm_cell.1} parent=0
    _
  %s9 = ssub.s32 1, %s7
  %s10 = scalar_select 0, %s9, %s7
  // Predicated region
  $region2: #{lstm_cell.1} parent=0 // pred_check
    _
  $region3: #{lstm_cell.1} parent=0 // pred_check_branch
    %12 = sbr.rel (0) target = $region5
  $region4: #{lstm_cell.1} parent=0 // pred_region
    _
  $region5: #{lstm_cell.1} parent=0 // pred_fallthru
    _
  // Predicated region
  $region6: #{lstm_cell.1} parent=0 // pred_check
    _
  $region7: #{lstm_cell.1} parent=0 // pred_check_branch
    %14 = sbr.rel (0) target = $region9
  $region8: #{lstm_cell.1} parent=0 // pred_region
    _
  $region9: #{lstm_cell.1} parent=0 // pred_fallthru
    _
  // Predicated region
  $region10: #{lstm_cell.1} parent=0 // pred_check
    _
  $region11: #{lstm_cell.1} parent=0 // pred_check_branch
    %16 = sbr.rel (0) target = $region13
  $region12: #{lstm_cell.1} parent=0 // pred_region
    _
  $region13: #{lstm_cell.1} parent=0 // pred_fallthru
    _
  // Predicated region
  $region14: #{lstm_cell.1} parent=0 // pred_check
    _
  $region15: #{lstm_cell.1} parent=0 // pred_check_branch
    %18 = sbr.rel (0) target = $region17
  $region16: #{lstm_cell.1} parent=0 // pred_region
    _
  $region17: #{lstm_cell.1} parent=0 // pred_fallthru
    _
  %v19 = vld [vmem:[%s0] sm:$0xff]
  %v20 = vld [vmem:[%s0 + $0x8] sm:$0xff]
  %v21 = vld [vmem:[%s1] sm:$0xff]
  %v22 = vld [vmem:[%s1 + $0x8] sm:$0xff]
  %v23 = vld [vmem:[%s1 + $0x10] sm:$0xff]
  %v24 = vld [vmem:[%s1 + $0x18] sm:$0xff]
  %v25 = vld [vmem:[%s1 + $0x20] sm:$0xff]
  %v26 = vld [vmem:[%s1 + $0x28] sm:$0xff]
  %v27 = vld [vmem:[%s1 + $0x30] sm:$0xff]
  %v28 = vld [vmem:[%s1 + $0x38] sm:$0xff]
  %v29 = vld [vmem:[%s1 + $0x40] sm:$0xff]
  %v30 = vld [vmem:[%s1 + $0x48] sm:$0xff]
  %v31 = vld [vmem:[%s1 + $0x50] sm:$0xff]
  %v32 = vld [vmem:[%s1 + $0x58] sm:$0xff]
  %v33 = vld [vmem:[%s1 + $0x60] sm:$0xff]
  %v34 = vld [vmem:[%s1 + $0x68] sm:$0xff]
  %v35 = vld [vmem:[%s1 + $0x70] sm:$0xff]
  %v36 = vld [vmem:[%s1 + $0x78] sm:$0xff]
  %v37 = vld [vmem:[%s1 + $0x80] sm:$0xff]
  %v38 = vld [vmem:[%s1 + $0x88] sm:$0xff]
  %v39 = vld [vmem:[%s1 + $0x90] sm:$0xff]
  %v40 = vld [vmem:[%s1 + $0x98] sm:$0xff]
  %v41 = vld [vmem:[%s1 + $0xa0] sm:$0xff]
  %v42 = vld [vmem:[%s1 + $0xa8] sm:$0xff]
  %v43 = vld [vmem:[%s1 + $0xb0] sm:$0xff]
  %v44 = vld [vmem:[%s1 + $0xb8] sm:$0xff]
  %v45 = vld [vmem:[%s1 + $0xc0] sm:$0xff]
  %v46 = vld [vmem:[%s1 + $0xc8] sm:$0xff]
  %v47 = vld [vmem:[%s1 + $0xd0] sm:$0xff]
  %v48 = vld [vmem:[%s1 + $0xd8] sm:$0xff]
  %v49 = vld [vmem:[%s1 + $0xe0] sm:$0xff]
  %v50 = vld [vmem:[%s1 + $0xe8] sm:$0xff]
  %v51 = vld [vmem:[%s1 + $0xf0] sm:$0xff]
  %v52 = vld [vmem:[%s1 + $0xf8] sm:$0xff]
  %v53 = vld [vmem:[%s1 + $0x100] sm:$0xff]
  %v54 = vld [vmem:[%s1 + $0x108] sm:$0xff]
  %v55 = vld [vmem:[%s1 + $0x110] sm:$0xff]
  %v56 = vld [vmem:[%s1 + $0x118] sm:$0xff]
  %v57 = vld [vmem:[%s1 + $0x120] sm:$0xff]
  %v58 = vld [vmem:[%s1 + $0x128] sm:$0xff]
  %v59 = vld [vmem:[%s1 + $0x130] sm:$0xff]
  %v60 = vld [vmem:[%s1 + $0x138] sm:$0xff]
  %v61 = vld [vmem:[%s1 + $0x140] sm:$0xff]
  %v62 = vld [vmem:[%s1 + $0x148] sm:$0xff]
  %v63 = vld [vmem:[%s1 + $0x150] sm:$0xff]
  %v64 = vld [vmem:[%s1 + $0x158] sm:$0xff]
  %v65 = vld [vmem:[%s1 + $0x160] sm:$0xff]
  %v66 = vld [vmem:[%s1 + $0x168] sm:$0xff]
  %v67 = vld [vmem:[%s1 + $0x170] sm:$0xff]
  %v68 = vld [vmem:[%s1 + $0x178] sm:$0xff]
  %v69 = vld [vmem:[%s1 + $0x180] sm:$0xff]
  %v70 = vld [vmem:[%s1 + $0x188] sm:$0xff]
  %v71 = vld [vmem:[%s1 + $0x190] sm:$0xff]
  %v72 = vld [vmem:[%s1 + $0x198] sm:$0xff]
  %v73 = vld [vmem:[%s1 + $0x1a0] sm:$0xff]
  %v74 = vld [vmem:[%s1 + $0x1a8] sm:$0xff]
  %v75 = vld [vmem:[%s1 + $0x1b0] sm:$0xff]
  %v76 = vld [vmem:[%s1 + $0x1b8] sm:$0xff]
  %v77 = vld [vmem:[%s1 + $0x1c0] sm:$0xff]
  %v78 = vld [vmem:[%s1 + $0x1c8] sm:$0xff]
  %v79 = vld [vmem:[%s1 + $0x1d0] sm:$0xff]
  %v80 = vld [vmem:[%s1 + $0x1d8] sm:$0xff]
  %v81 = vld [vmem:[%s1 + $0x1e0] sm:$0xff]
  %v82 = vld [vmem:[%s1 + $0x1e8] sm:$0xff]
  %v83 = vld [vmem:[%s1 + $0x1f0] sm:$0xff]
  %v84 = vld [vmem:[%s1 + $0x1f8] sm:$0xff]
  %v85 = vld [vmem:[%s1 + $0x200] sm:$0xff]
  %v86 = vld [vmem:[%s1 + $0x208] sm:$0xff]
  %v87 = vld [vmem:[%s1 + $0x210] sm:$0xff]
  %v88 = vld [vmem:[%s1 + $0x218] sm:$0xff]
  %v89 = vld [vmem:[%s1 + $0x220] sm:$0xff]
  %v90 = vld [vmem:[%s1 + $0x228] sm:$0xff]
  %v91 = vld [vmem:[%s1 + $0x230] sm:$0xff]
  %v92 = vld [vmem:[%s1 + $0x238] sm:$0xff]
  %v93 = vld [vmem:[%s1 + $0x240] sm:$0xff]
  %v94 = vld [vmem:[%s1 + $0x248] sm:$0xff]
  %v95 = vld [vmem:[%s1 + $0x250] sm:$0xff]
  %v96 = vld [vmem:[%s1 + $0x258] sm:$0xff]
  %v97 = vld [vmem:[%s1 + $0x260] sm:$0xff]
  %v98 = vld [vmem:[%s1 + $0x268] sm:$0xff]
  %v99 = vld [vmem:[%s1 + $0x270] sm:$0xff]
  %v100 = vld [vmem:[%s1 + $0x278] sm:$0xff]
  %v101 = vld [vmem:[%s1 + $0x280] sm:$0xff]
  %v102 = vld [vmem:[%s1 + $0x288] sm:$0xff]
  %v103 = vld [vmem:[%s1 + $0x290] sm:$0xff]
  %v104 = vld [vmem:[%s1 + $0x298] sm:$0xff]
  %v105 = vld [vmem:[%s1 + $0x2a0] sm:$0xff]
  %v106 = vld [vmem:[%s1 + $0x2a8] sm:$0xff]
  %v107 = vld [vmem:[%s1 + $0x2b0] sm:$0xff]
  %v108 = vld [vmem:[%s1 + $0x2b8] sm:$0xff]
  %v109 = vld [vmem:[%s1 + $0x2c0] sm:$0xff]
  %v110 = vld [vmem:[%s1 + $0x2c8] sm:$0xff]
  %v111 = vld [vmem:[%s1 + $0x2d0] sm:$0xff]
  %v112 = vld [vmem:[%s1 + $0x2d8] sm:$0xff]
  %v113 = vld [vmem:[%s1 + $0x2e0] sm:$0xff]
  %v114 = vld [vmem:[%s1 + $0x2e8] sm:$0xff]
  %v115 = vld [vmem:[%s1 + $0x2f0] sm:$0xff]
  %v116 = vld [vmem:[%s1 + $0x2f8] sm:$0xff]
  %v117 = vld [vmem:[%s1 + $0x300] sm:$0xff]
  %v118 = vld [vmem:[%s1 + $0x308] sm:$0xff]
  %v119 = vld [vmem:[%s1 + $0x310] sm:$0xff]
  %v120 = vld [vmem:[%s1 + $0x318] sm:$0xff]
  %v121 = vld [vmem:[%s1 + $0x320] sm:$0xff]
  %v122 = vld [vmem:[%s1 + $0x328] sm:$0xff]
  %v123 = vld [vmem:[%s1 + $0x330] sm:$0xff]
  %v124 = vld [vmem:[%s1 + $0x338] sm:$0xff]
  %v125 = vld [vmem:[%s1 + $0x340] sm:$0xff]
  %v126 = vld [vmem:[%s1 + $0x348] sm:$0xff]
  %v127 = vld [vmem:[%s1 + $0x350] sm:$0xff]
  %v128 = vld [vmem:[%s1 + $0x358] sm:$0xff]
  %v129 = vld [vmem:[%s1 + $0x360] sm:$0xff]
  %v130 = vld [vmem:[%s1 + $0x368] sm:$0xff]
  %v131 = vld [vmem:[%s1 + $0x370] sm:$0xff]
  %v132 = vld [vmem:[%s1 + $0x378] sm:$0xff]
  %v133 = vld [vmem:[%s1 + $0x380] sm:$0xff]
  %v134 = vld [vmem:[%s1 + $0x388] sm:$0xff]
  %v135 = vld [vmem:[%s1 + $0x390] sm:$0xff]
  %v136 = vld [vmem:[%s1 + $0x398] sm:$0xff]
  %v137 = vld [vmem:[%s1 + $0x3a0] sm:$0xff]
  %v138 = vld [vmem:[%s1 + $0x3a8] sm:$0xff]
  %v139 = vld [vmem:[%s1 + $0x3b0] sm:$0xff]
  %v140 = vld [vmem:[%s1 + $0x3b8] sm:$0xff]
  %v141 = vld [vmem:[%s1 + $0x3c0] sm:$0xff]
  %v142 = vld [vmem:[%s1 + $0x3c8] sm:$0xff]
  %v143 = vld [vmem:[%s1 + $0x3d0] sm:$0xff]
  %v144 = vld [vmem:[%s1 + $0x3d8] sm:$0xff]
  %v145 = vld [vmem:[%s1 + $0x3e0] sm:$0xff]
  %v146 = vld [vmem:[%s1 + $0x3e8] sm:$0xff]
  %v147 = vld [vmem:[%s1 + $0x3f0] sm:$0xff]
  %v148 = vld [vmem:[%s1 + $0x3f8] sm:$0xff]
  %v149 = vld [vmem:[%s2] sm:$0xf]
  %v151 = vlaneseq
  %v152 = vshrl.u32 %v151, 7
  %v153 = vsub.s32 0, %v152
  %v154 = vrot.slane %v149, %v153
  %v155 = vlaneseq
  %v156 = vshrl.u32 %v155, 7
  %v157 = vsub.s32 1, %v156
  %v158 = vrot.slane %v149, %v157
  %v159 = vlaneseq
  %v160 = vshrl.u32 %v159, 7
  %v161 = vsub.s32 2, %v160
  %v162 = vrot.slane %v149, %v161
  %v163 = vlaneseq
  %v164 = vshrl.u32 %v163, 7
  %v165 = vsub.s32 3, %v164
  %v166 = vrot.slane %v149, %v165
  %171 = vmatprep.subr.mxu0 %v22
  %172 = vmatpush1.msra.mxu0 %v21
  %173 = vmatprep.subr.mxu0 %v26
  %174 = vmatpush1.msra.mxu0 %v25
  %175 = vmatprep.subr.mxu0 %v30
  %176 = vmatpush1.msra.mxu0 %v29
  %177 = vmatprep.subr.mxu0 %v34
  %178 = vmatpush1.msra.mxu0 %v33
  %179 = vmatprep.subr.mxu0 %v38
  %180 = vmatpush1.msra.mxu0 %v37
  %181 = vmatprep.subr.mxu0 %v42
  %182 = vmatpush1.msra.mxu0 %v41
  %183 = vmatprep.subr.mxu0 %v46
  %184 = vmatpush1.msra.mxu0 %v45
  %185 = vmatprep.subr.mxu0 %v50
  %186 = vmatpush1.msra.mxu0 %v49
  %187 = vmatprep.subr.mxu0 %v54
  %188 = vmatpush1.msra.mxu0 %v53
  %189 = vmatprep.subr.mxu0 %v58
  %190 = vmatpush1.msra.mxu0 %v57
  %191 = vmatprep.subr.mxu0 %v62
  %192 = vmatpush1.msra.mxu0 %v61
  %193 = vmatprep.subr.mxu0 %v66
  %194 = vmatpush1.msra.mxu0 %v65
  %195 = vmatprep.subr.mxu0 %v70
  %196 = vmatpush1.msra.mxu0 %v69
  %197 = vmatprep.subr.mxu0 %v74
  %198 = vmatpush1.msra.mxu0 %v73
  %199 = vmatprep.subr.mxu0 %v78
  %200 = vmatpush1.msra.mxu0 %v77
  %201 = vmatprep.subr.mxu0 %v82
  %202 = vmatpush1.msra.mxu0 %v81
  %203 = vmatprep.subr.mxu0 %v86
  %204 = vmatpush1.msra.mxu0 %v85
  %205 = vmatprep.subr.mxu0 %v90
  %206 = vmatpush1.msra.mxu0 %v89
  %207 = vmatprep.subr.mxu0 %v94
  %208 = vmatpush1.msra.mxu0 %v93
  %209 = vmatprep.subr.mxu0 %v98
  %210 = vmatpush1.msra.mxu0 %v97
  %211 = vmatprep.subr.mxu0 %v102
  %212 = vmatpush1.msra.mxu0 %v101
  %213 = vmatprep.subr.mxu0 %v106
  %214 = vmatpush1.msra.mxu0 %v105
  %215 = vmatprep.subr.mxu0 %v110
  %216 = vmatpush1.msra.mxu0 %v109
  %217 = vmatprep.subr.mxu0 %v114
  %218 = vmatpush1.msra.mxu0 %v113
  %219 = vmatprep.subr.mxu0 %v118
  %220 = vmatpush1.msra.mxu0 %v117
  %221 = vmatprep.subr.mxu0 %v122
  %222 = vmatpush1.msra.mxu0 %v121
  %223 = vmatprep.subr.mxu0 %v126
  %224 = vmatpush1.msra.mxu0 %v125
  %225 = vmatprep.subr.mxu0 %v130
  %226 = vmatpush1.msra.mxu0 %v129
  %227 = vmatprep.subr.mxu0 %v134
  %228 = vmatpush1.msra.mxu0 %v133
  %229 = vmatprep.subr.mxu0 %v138
  %230 = vmatpush1.msra.mxu0 %v137
  %231 = vmatprep.subr.mxu0 %v142
  %232 = vmatpush1.msra.mxu0 %v141
  %233 = vmatprep.subr.mxu0 %v146
  %234 = vmatpush1.msra.mxu0 %v145
  %235 = vmatprep.mubr.f32.mxu0 %v20
  %236 = vmatmul.mubr.f32.gmra.mrb[0].mxu0 %v19
  %v237 = vpop.f32.mrb[0].mxu0
  %v238 = vadd.f32 %v154, %v237
  %v239 = vpop.f32.mrb[0].mxu0
  %v240 = vadd.f32 %v158, %v239
  %241 = vdwg.mxu0
  %242 = vmatprep.subr.mxu0 %v24
  %243 = vmatpush1.msra.mxu0 %v23
  %244 = vmatprep.subr.mxu0 %v28
  %245 = vmatpush1.msra.mxu0 %v27
  %246 = vmatprep.subr.mxu0 %v32
  %247 = vmatpush1.msra.mxu0 %v31
  %248 = vmatprep.subr.mxu0 %v36
  %249 = vmatpush1.msra.mxu0 %v35
  %250 = vmatprep.subr.mxu0 %v40
  %251 = vmatpush1.msra.mxu0 %v39
  %252 = vmatprep.subr.mxu0 %v44
  %253 = vmatpush1.msra.mxu0 %v43
  %254 = vmatprep.subr.mxu0 %v48
  %255 = vmatpush1.msra.mxu0 %v47
  %256 = vmatprep.subr.mxu0 %v52
  %257 = vmatpush1.msra.mxu0 %v51
  %258 = vmatprep.subr.mxu0 %v56
  %259 = vmatpush1.msra.mxu0 %v55
  %260 = vmatprep.subr.mxu0 %v60
  %261 = vmatpush1.msra.mxu0 %v59
  %262 = vmatprep.subr.mxu0 %v64
  %263 = vmatpush1.msra.mxu0 %v63
  %264 = vmatprep.subr.mxu0 %v68
  %265 = vmatpush1.msra.mxu0 %v67
  %266 = vmatprep.subr.mxu0 %v72
  %267 = vmatpush1.msra.mxu0 %v71
  %268 = vmatprep.subr.mxu0 %v76
  %269 = vmatpush1.msra.mxu0 %v75
  %270 = vmatprep.subr.mxu0 %v80
  %271 = vmatpush1.msra.mxu0 %v79
  %272 = vmatprep.subr.mxu0 %v84
  %273 = vmatpush1.msra.mxu0 %v83
  %274 = vmatprep.subr.mxu0 %v88
  %275 = vmatpush1.msra.mxu0 %v87
  %276 = vmatprep.subr.mxu0 %v92
  %277 = vmatpush1.msra.mxu0 %v91
  %278 = vmatprep.subr.mxu0 %v96
  %279 = vmatpush1.msra.mxu0 %v95
  %280 = vmatprep.subr.mxu0 %v100
  %281 = vmatpush1.msra.mxu0 %v99
  %282 = vmatprep.subr.mxu0 %v104
  %283 = vmatpush1.msra.mxu0 %v103
  %284 = vmatprep.subr.mxu0 %v108
  %285 = vmatpush1.msra.mxu0 %v107
  %286 = vmatprep.subr.mxu0 %v112
  %287 = vmatpush1.msra.mxu0 %v111
  %288 = vmatprep.subr.mxu0 %v116
  %289 = vmatpush1.msra.mxu0 %v115
  %290 = vmatprep.subr.mxu0 %v120
  %291 = vmatpush1.msra.mxu0 %v119
  %292 = vmatprep.subr.mxu0 %v124
  %293 = vmatpush1.msra.mxu0 %v123
  %294 = vmatprep.subr.mxu0 %v128
  %295 = vmatpush1.msra.mxu0 %v127
  %296 = vmatprep.subr.mxu0 %v132
  %297 = vmatpush1.msra.mxu0 %v131
  %298 = vmatprep.subr.mxu0 %v136
  %299 = vmatpush1.msra.mxu0 %v135
  %300 = vmatprep.subr.mxu0 %v140
  %301 = vmatpush1.msra.mxu0 %v139
  %302 = vmatprep.subr.mxu0 %v144
  %303 = vmatpush1.msra.mxu0 %v143
  %304 = vmatprep.subr.mxu0 %v148
  %305 = vmatpush1.msra.mxu0 %v147
  %306 = vmatprep.mubr.f32.mxu0 %v20
  %307 = vmatmul.mubr.f32.gmra.mrb[0].mxu0 %v19
  %v308 = vpop.f32.mrb[0].mxu0
  %v309 = vadd.f32 %v162, %v308
  %v310 = vpop.f32.mrb[0].mxu0
  %v311 = vadd.f32 %v166, %v310
  %312 = vdwg.mxu0
  %v313 = vxor.u32 %v238, 2147483648
  %v314 = vmul.f32 %v313, 1.442695
  %v315 = vpow.pop %v314
  %v316 = vadd.f32 %v315, 1.0
  %v317 = vrcp.pop %v316
  %v318 = vmul.f32 1.0, %v317
  %v319 = vxor.u32 %v240, 2147483648
  %v320 = vmul.f32 %v319, 1.442695
  %v321 = vpow.pop %v320
  %v322 = vadd.f32 %v321, 1.0
  %v323 = vrcp.pop %v322
  %v324 = vmul.f32 1.0, %v323
  %v325 = vxor.u32 %v309, 2147483648
  %v326 = vmul.f32 %v325, 1.442695
  %v327 = vpow.pop %v326
  %v328 = vadd.f32 %v327, 1.0
  %v329 = vrcp.pop %v328
  %v330 = vmul.f32 1.0, %v329
  %v331 = vtanh.pop %v311
  %v332 = vld [vmem:[%s3] sm:$0xff]
  %v333 = vmul.f32 %v318, %v332
  %v334 = vmul.f32 %v324, %v331
  %v335 = vadd.f32 %v333, %v334
  %v336 = vtanh.pop %v335
  %v337 = vmul.f32 %v330, %v336
  %338 = vst [vmem:[%s5] sm:$0xff] %v335
  %339 = vst [vmem:[%s4] sm:$0xff] %v337
  // Predicated region
  $region18: #{lstm_cell.1} parent=0 // pred_check
    _
  $region19: #{lstm_cell.1} parent=0 // pred_check_branch
    %341 = sbr.rel (0) target = $region21
  $region20: #{lstm_cell.1} parent=0 // pred_region
    _
  $region21: #{lstm_cell.1} parent=0 // pred_fallthru
    _
  // Predicated region
  $region22: #{lstm_cell.1} parent=0 // pred_check
    _
  $region23: #{lstm_cell.1} parent=0 // pred_check_branch
    %343 = sbr.rel (0) target = $region25
  $region24: #{lstm_cell.1} parent=0 // pred_region
    _
  $region25: #{lstm_cell.1} parent=0 // pred_fallthru
    _
  // Predicated region
  $region26: #{lstm_cell.1} parent=0 // pred_check
    _
  $region27: #{lstm_cell.1} parent=0 // pred_check_branch
    %345 = sbr.rel (0) target = $region29
  $region28: #{lstm_cell.1} parent=0 // pred_region
    _
  $region29: #{lstm_cell.1} parent=0 // pred_fallthru
    _
  // Predicated region
  $region30: #{lstm_cell.1} parent=0 // pred_check
    _
  $region31: #{lstm_cell.1} parent=0 // pred_check_branch
    %347 = sbr.rel (0) target = $region33
  $region32: #{lstm_cell.1} parent=0 // pred_region
    _
  $region33: #{lstm_cell.1} parent=0 // pred_fallthru
    _

</llo_original>
